<compile_context>
chip_gen: v7x
topology: tpu7x:2x2x1
jax: 0.10.0
libtpu: 0.0.40
codegen_flags: <defaults>
</compile_context>

<pallas_src>
import jax
import jax.numpy as jnp
from jax.experimental import pallas as pl
from jax.experimental.pallas import tpu as pltpu

INF_CONST = 1e12  # matches 1000000000000.0 in the PyTorch module


def _mcce_kernel(pred_ref, true_ref, out_ref, acc_ref):
    i = pl.program_id(1)  # inner ("arbitrary") reduction axis

    @pl.when(i == 0)
    def _():
        acc_ref[...] = jnp.zeros_like(acc_ref)

    # Cast in-kernel; HBM traffic stays in the native (possibly narrow) dtype.
    y_pred = pred_ref[...].astype(jnp.float32)
    y_true = true_ref[...].astype(jnp.float32)

    # y_pred = (1 - 2*y_true) * y_pred ; mask positives / negatives.
    yp = (1.0 - 2.0 * y_true) * y_pred
    x_neg = yp - y_true * INF_CONST
    x_pos = yp - (1.0 - y_true) * INF_CONST

    # logsumexp([x, 0]) along lanes, numerically stable; keep (m, s) pairs so
    # the two logs can be fused into one.
    m_neg = jnp.maximum(jnp.max(x_neg, axis=-1, keepdims=True), 0.0)
    s_neg = jnp.sum(jnp.exp(x_neg - m_neg), axis=-1, keepdims=True) + jnp.exp(-m_neg)
    m_pos = jnp.maximum(jnp.max(x_pos, axis=-1, keepdims=True), 0.0)
    s_pos = jnp.sum(jnp.exp(x_pos - m_pos), axis=-1, keepdims=True) + jnp.exp(-m_pos)

    # per-row loss, accumulated as a (tile_rows, 1) vector (no per-step
    # sublane reduce / scalar carry).
    acc_ref[...] += m_neg + m_pos + jnp.log(s_neg * s_pos)

    @pl.when(i == pl.num_programs(1) - 1)
    def _():
        part = jnp.sum(acc_ref[...])
        # Lane-dense (8,128) slot per super-block, filled with the partial sum.
        out_ref[...] = part + jnp.zeros_like(out_ref)


def _round_up(x, m):
    return ((x + m - 1) // m) * m


def multilabel_categorical_crossentropy(
    y_pred,
    y_true,
    *,
    max_tile_rows=8192,
    target_block_bytes=2 * 1024 * 1024,
    num_superblocks=4,
):
    """Pallas TPU implementation of the PyTorch module's forward()."""
    assert y_pred.shape == y_true.shape
    C = y_pred.shape[-1]
    N = 1
    for d in y_pred.shape[:-1]:
        N *= d

    # Keep native dtypes over HBM; the kernel casts to f32 internally.
    pred2d = jnp.reshape(y_pred, (N, C))
    true2d = jnp.reshape(y_true, (N, C))

    # Row tile sized against an f32 working set of ~target_block_bytes.
    # Multiple of 32 sublanes -> valid tiling for f32 / bf16 / int8 inputs.
    tr = target_block_bytes // max(1, C * 4)
    tr = min(tr, max_tile_rows, _round_up(N, 32))
    tr = max(32, (tr // 32) * 32)

    total_blocks = pl.cdiv(N, tr)
    ns = max(1, min(num_superblocks, total_blocks))   # parallel super-blocks
    bps = pl.cdiv(total_blocks, ns)                   # inner blocks / super-block
    n_rows_padded = ns * bps * tr

    pad = n_rows_padded - N
    if pad:
        # Padded rows contribute exactly 0 loss:
        #   y_true = 0, y_pred = -INF  =>  lse([-INF,...,0]) = 0 for both terms.
        pred_pad = jnp.full((pad, C), -INF_CONST, dtype=pred2d.dtype)
        true_pad = jnp.zeros((pad, C), dtype=true2d.dtype)
        pred2d = jnp.concatenate([pred2d, pred_pad], axis=0)
        true2d = jnp.concatenate([true2d, true_pad], axis=0)

    cost = pl.CostEstimate(
        flops=8 * N * C,
        transcendentals=2 * N * C + 3 * N,
        bytes_accessed=int(pred2d.size) * pred2d.dtype.itemsize
        + int(true2d.size) * true2d.dtype.itemsize
        + ns * 8 * 128 * 4,
    )

    partials = pl.pallas_call(
        _mcce_kernel,
        out_shape=jax.ShapeDtypeStruct((8 * ns, 128), jnp.float32),
        grid_spec=pltpu.PrefetchScalarGridSpec(
            num_scalar_prefetch=0,
            grid=(ns, bps),
            in_specs=[
                pl.BlockSpec((tr, C), lambda s, i: (s * bps + i, 0)),
                pl.BlockSpec((tr, C), lambda s, i: (s * bps + i, 0)),
            ],
            out_specs=pl.BlockSpec((8, 128), lambda s, i: (s, 0)),
            scratch_shapes=[pltpu.VMEM((tr, 1), jnp.float32)],
        ),
        compiler_params=pltpu.CompilerParams(
            dimension_semantics=("parallel", "arbitrary"),
            vmem_limit_bytes=32 * 1024 * 1024,
        ),
        cost_estimate=cost,
    )(pred2d, true2d)

    # One scalar per super-block lives at [8*s, 0]; reduce + mean in JAX.
    total = jnp.sum(partials[::8, 0])
    return total / jnp.float32(N)


def _reference(y_pred, y_true):
    y_pred = y_pred.astype(jnp.float32)
    y_true = y_true.astype(jnp.float32)
    yp = (1.0 - 2.0 * y_true) * y_pred
    y_pred_neg = yp - y_true * INF_CONST
    y_pred_pos = yp - (1.0 - y_true) * INF_CONST
    zeros = jnp.zeros_like(yp[..., :1])
    y_pred_neg = jnp.concatenate([y_pred_neg, zeros], axis=-1)
    y_pred_pos = jnp.concatenate([y_pred_pos, zeros], axis=-1)
    neg_loss = jax.scipy.special.logsumexp(y_pred_neg, axis=-1)
    pos_loss = jax.scipy.special.logsumexp(y_pred_pos, axis=-1)
    return jnp.mean(neg_loss + pos_loss)


if __name__ == "__main__":
    # Small shapes consistent with GlobalPointer-style usage:
    # (batch=2, seq=8, num_labels=64) -> logsumexp over the label axis.
    key = jax.random.PRNGKey(0)
    k1, k2 = jax.random.split(key)
    shape = (2, 8, 64)
    y_pred = jax.random.normal(k1, shape, dtype=jnp.float32) * 3.0
    y_true = (jax.random.uniform(k2, shape) < 0.1).astype(jnp.float32)

    loss = jax.block_until_ready(multilabel_categorical_crossentropy(y_pred, y_true))
    ref = jax.block_until_ready(_reference(y_pred, y_true))
    assert jnp.allclose(loss, ref, rtol=1e-5, atol=1e-5), (loss, ref)

    # Native low-precision inputs travel over HBM untouched (bf16 logits,
    # bf16 {0,1} labels); math is still f32 inside the kernel.
    yp_bf16 = y_pred.astype(jnp.bfloat16)
    yt_bf16 = y_true.astype(jnp.bfloat16)
    loss_bf16 = jax.block_until_ready(
        multilabel_categorical_crossentropy(yp_bf16, yt_bf16)
    )
    ref_bf16 = jax.block_until_ready(
        _reference(yp_bf16.astype(jnp.float32), yt_bf16.astype(jnp.float32))
    )
    assert jnp.allclose(loss_bf16, ref_bf16, rtol=1e-4, atol=1e-4), (loss_bf16, ref_bf16)

    print("KERNEL_OK")
</pallas_src>

<mosaic_0001>
module attributes {stable_mosaic.version = 11 : i64} {
  func.func @_mcce_kernel(%arg0: i32, %arg1: i32, %arg2: memref<32x64xf32, #tpu.memory_space<vmem>>, %arg3: memref<32x64xf32, #tpu.memory_space<vmem>>, %arg4: memref<8x128xf32, #tpu.memory_space<vmem>>, %arg5: memref<32x1xf32, #tpu.memory_space<vmem>>) attributes {dimension_semantics = [#tpu.dimension_semantics<parallel>, #tpu.dimension_semantics<arbitrary>], iteration_bounds = array<i64: 1, 1>, scalar_prefetch = 0 : i64, scratch_operands = 1 : i64, tpu.core_type = #tpu.core_type<tc>, window_params = [{transform_indices = @transform_0, window_bounds = array<i64: 32, 64>}, {transform_indices = @transform_1, window_bounds = array<i64: 32, 64>}, {transform_indices = @transform_2, window_bounds = array<i64: 8, 128>}]} {
    %c0_i32 = arith.constant 0 : i32
    %0 = arith.cmpi eq, %arg1, %c0_i32 : i32
    %1 = arith.extui %0 : i1 to i32
    %c0_i32_0 = arith.constant 0 : i32
    %2 = arith.cmpi ne, %1, %c0_i32_0 : i32
    scf.if %2 {
      %cst_22 = arith.constant 0.000000e+00 : f32
      %54 = vector.broadcast %cst_22 : f32 to vector<32x1xf32>
      %c0_23 = arith.constant 0 : index
      %c0_24 = arith.constant 0 : index
      %55 = vector.load %arg5[%c0_23, %c0_24] : memref<32x1xf32, #tpu.memory_space<vmem>>, vector<32x1xf32>
      tpu.vector_store %arg5[%c0_23, %c0_24], %54 {strides = array<i32>} : memref<32x1xf32, #tpu.memory_space<vmem>>, vector<32x1xf32>,
    } else {
    }
    %c0 = arith.constant 0 : index
    %c0_1 = arith.constant 0 : index
    %3 = vector.load %arg2[%c0, %c0_1] : memref<32x64xf32, #tpu.memory_space<vmem>>, vector<32x64xf32>
    %c0_2 = arith.constant 0 : index
    %c0_3 = arith.constant 0 : index
    %4 = vector.load %arg3[%c0_2, %c0_3] : memref<32x64xf32, #tpu.memory_space<vmem>>, vector<32x64xf32>
    %cst = arith.constant 2.000000e+00 : f32
    %5 = vector.broadcast %cst : f32 to vector<32x64xf32>
    %6 = arith.mulf %5, %4 : vector<32x64xf32>
    %cst_4 = arith.constant 1.000000e+00 : f32
    %7 = vector.broadcast %cst_4 : f32 to vector<32x64xf32>
    %8 = arith.subf %7, %6 : vector<32x64xf32>
    %9 = arith.mulf %8, %3 : vector<32x64xf32>
    %cst_5 = arith.constant 9.99999995E+11 : f32
    %10 = vector.broadcast %cst_5 : f32 to vector<32x64xf32>
    %11 = arith.mulf %4, %10 : vector<32x64xf32>
    %12 = arith.subf %9, %11 : vector<32x64xf32>
    %cst_6 = arith.constant 1.000000e+00 : f32
    %13 = vector.broadcast %cst_6 : f32 to vector<32x64xf32>
    %14 = arith.subf %13, %4 : vector<32x64xf32>
    %cst_7 = arith.constant 9.99999995E+11 : f32
    %15 = vector.broadcast %cst_7 : f32 to vector<32x64xf32>
    %16 = arith.mulf %14, %15 : vector<32x64xf32>
    %17 = arith.subf %9, %16 : vector<32x64xf32>
    %cst_8 = arith.constant dense<0xFF800000> : vector<32xf32>
    %18 = vector.multi_reduction <maximumf>, %12, %cst_8 [1] : vector<32x64xf32> to vector<32xf32>
    %19 = vector.shape_cast %18 : vector<32xf32> to vector<32x1xf32>
    %cst_9 = arith.constant 0.000000e+00 : f32
    %20 = vector.broadcast %cst_9 : f32 to vector<32x1xf32>
    %21 = arith.maximumf %19, %20 : vector<32x1xf32>
    %22 = vector.broadcast %21 : vector<32x1xf32> to vector<32x64xf32>
    %23 = arith.subf %12, %22 : vector<32x64xf32>
    %24 = math.exp %23 : vector<32x64xf32>
    %cst_10 = arith.constant dense<0.000000e+00> : vector<32xf32>
    %25 = vector.multi_reduction <add>, %24, %cst_10 [1] : vector<32x64xf32> to vector<32xf32>
    %26 = vector.shape_cast %25 : vector<32xf32> to vector<32x1xf32>
    %cst_11 = arith.constant 0.000000e+00 : f32
    %27 = vector.broadcast %cst_11 : f32 to vector<32x1xf32>
    %28 = arith.subf %27, %21 : vector<32x1xf32>
    %29 = math.exp %28 : vector<32x1xf32>
    %30 = arith.addf %26, %29 : vector<32x1xf32>
    %cst_12 = arith.constant dense<0xFF800000> : vector<32xf32>
    %31 = vector.multi_reduction <maximumf>, %17, %cst_12 [1] : vector<32x64xf32> to vector<32xf32>
    %32 = vector.shape_cast %31 : vector<32xf32> to vector<32x1xf32>
    %cst_13 = arith.constant 0.000000e+00 : f32
    %33 = vector.broadcast %cst_13 : f32 to vector<32x1xf32>
    %34 = arith.maximumf %32, %33 : vector<32x1xf32>
    %35 = vector.broadcast %34 : vector<32x1xf32> to vector<32x64xf32>
    %36 = arith.subf %17, %35 : vector<32x64xf32>
    %37 = math.exp %36 : vector<32x64xf32>
    %cst_14 = arith.constant dense<0.000000e+00> : vector<32xf32>
    %38 = vector.multi_reduction <add>, %37, %cst_14 [1] : vector<32x64xf32> to vector<32xf32>
    %39 = vector.shape_cast %38 : vector<32xf32> to vector<32x1xf32>
    %cst_15 = arith.constant 0.000000e+00 : f32
    %40 = vector.broadcast %cst_15 : f32 to vector<32x1xf32>
    %41 = arith.subf %40, %34 : vector<32x1xf32>
    %42 = math.exp %41 : vector<32x1xf32>
    %43 = arith.addf %39, %42 : vector<32x1xf32>
    %c0_16 = arith.constant 0 : index
    %c0_17 = arith.constant 0 : index
    %44 = vector.load %arg5[%c0_16, %c0_17] : memref<32x1xf32, #tpu.memory_space<vmem>>, vector<32x1xf32>
    %45 = arith.addf %21, %34 : vector<32x1xf32>
    %46 = arith.mulf %30, %43 : vector<32x1xf32>
    %47 = math.log %46 : vector<32x1xf32>
    %48 = arith.addf %45, %47 : vector<32x1xf32>
    %49 = arith.addf %44, %48 : vector<32x1xf32>
    %c0_18 = arith.constant 0 : index
    %c0_19 = arith.constant 0 : index
    %50 = vector.load %arg5[%c0_18, %c0_19] : memref<32x1xf32, #tpu.memory_space<vmem>>, vector<32x1xf32>
    tpu.vector_store %arg5[%c0_18, %c0_19], %49 {strides = array<i32>} : memref<32x1xf32, #tpu.memory_space<vmem>>, vector<32x1xf32>,
    %c0_i32_20 = arith.constant 0 : i32
    %51 = arith.cmpi eq, %arg1, %c0_i32_20 : i32
    %52 = arith.extui %51 : i1 to i32
    %c0_i32_21 = arith.constant 0 : i32
    %53 = arith.cmpi ne, %52, %c0_i32_21 : i32
    scf.if %53 {
      %c0_22 = arith.constant 0 : index
      %c0_23 = arith.constant 0 : index
      %54 = vector.load %arg5[%c0_22, %c0_23] : memref<32x1xf32, #tpu.memory_space<vmem>>, vector<32x1xf32>
      %55 = vector.shape_cast %54 : vector<32x1xf32> to vector<1x32x1xf32>
      %cst_24 = arith.constant dense<0.000000e+00> : vector<1xf32>
      %56 = vector.multi_reduction <add>, %55, %cst_24 [1, 2] : vector<1x32x1xf32> to vector<1xf32>
      %57 = vector.shape_cast %56 : vector<1xf32> to vector<1x1x1xf32>
      %58 = vector.extract %57[0, 0, 0] : f32 from vector<1x1x1xf32>
      %cst_25 = arith.constant 0.000000e+00 : f32
      %59 = vector.broadcast %cst_25 : f32 to vector<8x128xf32>
      %60 = vector.broadcast %58 : f32 to vector<8x128xf32>
      %61 = arith.addf %60, %59 : vector<8x128xf32>
      %c0_26 = arith.constant 0 : index
      %c0_27 = arith.constant 0 : index
      %62 = vector.load %arg4[%c0_26, %c0_27] : memref<8x128xf32, #tpu.memory_space<vmem>>, vector<8x128xf32>
      tpu.vector_store %arg4[%c0_26, %c0_27], %61 {strides = array<i32>} : memref<8x128xf32, #tpu.memory_space<vmem>>, vector<8x128xf32>,
    } else {
    }
    return
  }
  func.func @transform_0(%arg0: i32, %arg1: i32) -> (i32, i32) {
    %c1_i32 = arith.constant 1 : i32
    %0 = arith.muli %arg0, %c1_i32 : i32
    %1 = arith.addi %0, %arg1 : i32
    %c0_i32 = arith.constant 0 : i32
    %c0_i32_0 = arith.constant 0 : i32
    return %1, %c0_i32 : i32, i32
  }
  func.func @transform_1(%arg0: i32, %arg1: i32) -> (i32, i32) {
    %c1_i32 = arith.constant 1 : i32
    %0 = arith.muli %arg0, %c1_i32 : i32
    %1 = arith.addi %0, %arg1 : i32
    %c0_i32 = arith.constant 0 : i32
    %c0_i32_0 = arith.constant 0 : i32
    return %1, %c0_i32 : i32, i32
  }
  func.func @transform_2(%arg0: i32, %arg1: i32) -> (i32, i32) {
    %c0_i32 = arith.constant 0 : i32
    %c0_i32_0 = arith.constant 0 : i32
    return %arg0, %c0_i32 : i32, i32
  }
}

</mosaic_0001>

<llo_original>
// kernel: tpu_custom_call.1
$region0: #{tpu_custom_call.1}
  #allocation0 [shape = 'u32[]', space=smem, size = 0x4, offset = 0x4, fixed_abs, tag = 'smem constant byte address 0x4 - core index']
  #allocation1 [shape = 'u32[144,128]{1,0:T(1,128)}', space=vmem, size = 0x12000, scoped, tag = 'internal scratch']
  #allocation2 [shape = 'f32[32,1]{1,0:T(8,128)}', space=vmem, size = 0x4000, scoped, tag = 'scratch operand']
  %s0 = inlined_call_operand.hbm [shape: f32[32,64], index: 0, kind: input, shape index: {}]
  %s1 = inlined_call_operand.hbm [shape: f32[32,64], index: 1, kind: input, shape index: {}]
  %s2 = inlined_call_operand.hbm [shape: f32[8,128], index: 2, kind: output, shape index: {}]
  %s3 = sld [smem:[#allocation0]]
  $region34: #{tpu_custom_call.1} parent=0
    _
  %s5 = ssub.s32 1, %s3
  %s6 = scalar_select 0, %s5, %s3
  $region1: #{tpu_custom_call.1} parent=0
    #allocation3 [shape = 'u8[16384]{0}', space=vmem, size = 0x4000, scoped, tag = 'input window, operand 0, single buffered']
    #allocation4 [shape = 's32[1]{0}', space=sflag, size = 0x4, scoped, tag = 'scoped memory for tpu_custom_call.1']
    #allocation5 [shape = 's32[1]{0}', space=sflag, size = 0x4, scoped, tag = 'scoped memory for tpu_custom_call.1']
    #allocation6 [shape = 'u8[16384]{0}', space=vmem, size = 0x4000, scoped, tag = 'input window, operand 1, single buffered']
    #allocation7 [shape = 's32[1]{0}', space=sflag, size = 0x4, scoped, tag = 'scoped memory for tpu_custom_call.1']
    #allocation8 [shape = 'u8[4096]{0}', space=vmem, size = 0x1000, scoped, tag = 'output window, operand 0, single buffered']
    %7 = vsyncpa [#allocation4], 0
    %8 = vsyncpa [#allocation7], 0
    %9 = vsyncpa [#allocation5], 0
    // Predicated region
    $region2: #{tpu_custom_call.1} parent=1 // pred_check
      _
    $region3: #{tpu_custom_call.1} parent=1 // pred_check_branch
      %11 = sbr.rel (0) target = $region5
    $region4: #{tpu_custom_call.1} parent=1 // pred_region
      %s12 = sadd.s32 0, 0
      %s13 = smul.u32 4, %s12
      %s15 = ssub.s32 512, 512
      %16 = vsyncadd [#allocation4], %s15
      %s17 = smul.addr %s13, 128
      %s18 = scalar_lea.hbm %s0, %s17
      %s19 = sshll.u32 [#allocation3], 4
      %s20 = int_to_ptr.vmem [resolvable:$true] %s19
      %25 = dma.hbm_to_vmem [thread:$0]  %s18, 512, %s20, [#allocation4], 128, 128, 8
    $region5: #{tpu_custom_call.1} parent=1 // pred_fallthru
      _
    // Predicated region
    $region6: #{tpu_custom_call.1} parent=1 // pred_check
      _
    $region7: #{tpu_custom_call.1} parent=1 // pred_check_branch
      %27 = sbr.rel (0) target = $region9
    $region8: #{tpu_custom_call.1} parent=1 // pred_region
      %s28 = sadd.s32 0, 0
      %s29 = smul.u32 4, %s28
      %s31 = ssub.s32 512, 512
      %32 = vsyncadd [#allocation7], %s31
      %s33 = smul.addr %s29, 128
      %s34 = scalar_lea.hbm %s1, %s33
      %s35 = sshll.u32 [#allocation6], 4
      %s36 = int_to_ptr.vmem [resolvable:$true] %s35
      %41 = dma.hbm_to_vmem [thread:$0]  %s34, 512, %s36, [#allocation7], 128, 128, 8
    $region9: #{tpu_custom_call.1} parent=1 // pred_fallthru
      _
    // Predicated region
    $region10: #{tpu_custom_call.1} parent=1 // pred_check
      _
    $region11: #{tpu_custom_call.1} parent=1 // pred_check_branch
      %43 = sbr.rel (0) target = $region13
    $region12: #{tpu_custom_call.1} parent=1 // pred_region
      %44 = dma.done [#allocation4], 512
    $region13: #{tpu_custom_call.1} parent=1 // pred_fallthru
      _
    // Predicated region
    $region14: #{tpu_custom_call.1} parent=1 // pred_check
      _
    $region15: #{tpu_custom_call.1} parent=1 // pred_check_branch
      %46 = sbr.rel (0) target = $region17
    $region16: #{tpu_custom_call.1} parent=1 // pred_region
      %47 = dma.done [#allocation7], 512
    $region17: #{tpu_custom_call.1} parent=1 // pred_fallthru
      _
    %s48 = sadd.s32 0, 0
    %s49 = smul.u32 4, %s48
    %s50 = sadd.s32 0, 0
    %s51 = smul.u32 4, %s50
    %p52 = scmp.eq.s32.totalorder 0, 0
    // Predicated region
    $region18: #{tpu_custom_call.1} parent=1 // pred_check
      %p53 = pneg %p52
    $region19: #{tpu_custom_call.1} parent=1 // pred_check_branch
      %55 = sbr.rel (%p53) target = $region21
    $region20: #{tpu_custom_call.1} parent=1 // pred_region
      %vm56 = vcmask 7168
      %57 = vst.msk [vmem:[#allocation2] sm:$0xff] %vm56, 0.0
      %58 = vst.msk [vmem:[#allocation2 + $0x8] sm:$0xff] %vm56, 0.0
      %59 = vst.msk [vmem:[#allocation2 + $0x10] sm:$0xff] %vm56, 0.0
      %60 = vst.msk [vmem:[#allocation2 + $0x18] sm:$0xff] %vm56, 0.0
    $region21: #{tpu_custom_call.1} parent=1 // pred_fallthru
      _
    %v61 = vld [vmem:[#allocation3] sm:$0xff]
    %v62 = vld [vmem:[#allocation3 + $0x8] sm:$0xff]
    %v63 = vld [vmem:[#allocation3 + $0x10] sm:$0xff]
    %v64 = vld [vmem:[#allocation3 + $0x18] sm:$0xff]
    %v65 = vld [vmem:[#allocation6] sm:$0xff]
    %v66 = vld [vmem:[#allocation6 + $0x8] sm:$0xff]
    %v67 = vld [vmem:[#allocation6 + $0x10] sm:$0xff]
    %v68 = vld [vmem:[#allocation6 + $0x18] sm:$0xff]
    %v69 = vmul.f32 %v65, 2.0
    %v70 = vmul.f32 %v66, 2.0
    %v71 = vmul.f32 %v67, 2.0
    %v72 = vmul.f32 %v68, 2.0
    %v73 = vsub.f32 1.0, %v69
    %v74 = vsub.f32 1.0, %v70
    %v75 = vsub.f32 1.0, %v71
    %v76 = vsub.f32 1.0, %v72
    %v77 = vmul.f32 %v73, %v61
    %v78 = vmul.f32 %v74, %v62
    %v79 = vmul.f32 %v75, %v63
    %v80 = vmul.f32 %v76, %v64
    %v81 = vmul.f32 %v65, 1e+12
    %v82 = vmul.f32 %v66, 1e+12
    %v83 = vmul.f32 %v67, 1e+12
    %v84 = vmul.f32 %v68, 1e+12
    %v85 = vsub.f32 %v77, %v81
    %v86 = vsub.f32 %v78, %v82
    %v87 = vsub.f32 %v79, %v83
    %v88 = vsub.f32 %v80, %v84
    %v89 = vsub.f32 1.0, %v65
    %v90 = vsub.f32 1.0, %v66
    %v91 = vsub.f32 1.0, %v67
    %v92 = vsub.f32 1.0, %v68
    %v93 = vmul.f32 %v89, 1e+12
    %v94 = vmul.f32 %v90, 1e+12
    %v95 = vmul.f32 %v91, 1e+12
    %v96 = vmul.f32 %v92, 1e+12
    %v97 = vsub.f32 %v77, %v93
    %v98 = vsub.f32 %v78, %v94
    %v99 = vsub.f32 %v79, %v95
    %v100 = vsub.f32 %v80, %v96
    %vm101 = vcmask 523264
    %v102 = vsel %vm101, %v85, -inf
    %103 = vmax.xlane.f32.xlu0 %v102
    %v104 = vpop.xlane.xlu0 %103
    %v105 = vsel %vm101, %v86, -inf
    %106 = vmax.xlane.f32.xlu0 %v105
    %v107 = vpop.xlane.xlu0 %106
    %v108 = vsel %vm101, %v87, -inf
    %109 = vmax.xlane.f32.xlu0 %v108
    %v110 = vpop.xlane.xlu0 %109
    %v111 = vsel %vm101, %v88, -inf
    %112 = vmax.xlane.f32.xlu0 %v111
    %v113 = vpop.xlane.xlu0 %112
    %v114 = vmax.f32 %v104, 0.0
    %v115 = vmax.f32 %v107, 0.0
    %v116 = vmax.f32 %v110, 0.0
    %v117 = vmax.f32 %v113, 0.0
    %v118 = vsub.f32 %v85, %v114
    %v119 = vsub.f32 %v86, %v115
    %v120 = vsub.f32 %v87, %v116
    %v121 = vsub.f32 %v88, %v117
    %v122 = vmul.f32 %v118, 1.442695
    %v123 = vpow.pop %v122
    %v124 = vmul.f32 %v119, 1.442695
    %v125 = vpow.pop %v124
    %v126 = vmul.f32 %v120, 1.442695
    %v127 = vpow.pop %v126
    %v128 = vmul.f32 %v121, 1.442695
    %v129 = vpow.pop %v128
    %v130 = vsel %vm101, %v123, 0.0
    %131 = vadd.xlane.f32.xlu0 %v130
    %v132 = vpop.xlane.xlu0 %131
    %v133 = vsel %vm101, %v125, 0.0
    %134 = vadd.xlane.f32.xlu0 %v133
    %v135 = vpop.xlane.xlu0 %134
    %v136 = vsel %vm101, %v127, 0.0
    %137 = vadd.xlane.f32.xlu0 %v136
    %v138 = vpop.xlane.xlu0 %137
    %v139 = vsel %vm101, %v129, 0.0
    %140 = vadd.xlane.f32.xlu0 %v139
    %v141 = vpop.xlane.xlu0 %140
    %v142 = vsub.f32 0.0, %v114
    %v143 = vsub.f32 0.0, %v115
    %v144 = vsub.f32 0.0, %v116
    %v145 = vsub.f32 0.0, %v117
    %v146 = vmul.f32 %v142, 1.442695
    %v147 = vpow.pop %v146
    %v148 = vmul.f32 %v143, 1.442695
    %v149 = vpow.pop %v148
    %v150 = vmul.f32 %v144, 1.442695
    %v151 = vpow.pop %v150
    %v152 = vmul.f32 %v145, 1.442695
    %v153 = vpow.pop %v152
    %v154 = vadd.f32 %v132, %v147
    %v155 = vadd.f32 %v135, %v149
    %v156 = vadd.f32 %v138, %v151
    %v157 = vadd.f32 %v141, %v153
    %v158 = vsel %vm101, %v97, -inf
    %159 = vmax.xlane.f32.xlu0 %v158
    %v160 = vpop.xlane.xlu0 %159
    %v161 = vsel %vm101, %v98, -inf
    %162 = vmax.xlane.f32.xlu0 %v161
    %v163 = vpop.xlane.xlu0 %162
    %v164 = vsel %vm101, %v99, -inf
    %165 = vmax.xlane.f32.xlu0 %v164
    %v166 = vpop.xlane.xlu0 %165
    %v167 = vsel %vm101, %v100, -inf
    %168 = vmax.xlane.f32.xlu0 %v167
    %v169 = vpop.xlane.xlu0 %168
    %v170 = vmax.f32 %v160, 0.0
    %v171 = vmax.f32 %v163, 0.0
    %v172 = vmax.f32 %v166, 0.0
    %v173 = vmax.f32 %v169, 0.0
    %v174 = vsub.f32 %v97, %v170
    %v175 = vsub.f32 %v98, %v171
    %v176 = vsub.f32 %v99, %v172
    %v177 = vsub.f32 %v100, %v173
    %v178 = vmul.f32 %v174, 1.442695
    %v179 = vpow.pop %v178
    %v180 = vmul.f32 %v175, 1.442695
    %v181 = vpow.pop %v180
    %v182 = vmul.f32 %v176, 1.442695
    %v183 = vpow.pop %v182
    %v184 = vmul.f32 %v177, 1.442695
    %v185 = vpow.pop %v184
    %v186 = vsel %vm101, %v179, 0.0
    %187 = vadd.xlane.f32.xlu0 %v186
    %v188 = vpop.xlane.xlu0 %187
    %v189 = vsel %vm101, %v181, 0.0
    %190 = vadd.xlane.f32.xlu0 %v189
    %v191 = vpop.xlane.xlu0 %190
    %v192 = vsel %vm101, %v183, 0.0
    %193 = vadd.xlane.f32.xlu0 %v192
    %v194 = vpop.xlane.xlu0 %193
    %v195 = vsel %vm101, %v185, 0.0
    %196 = vadd.xlane.f32.xlu0 %v195
    %v197 = vpop.xlane.xlu0 %196
    %v198 = vsub.f32 0.0, %v170
    %v199 = vsub.f32 0.0, %v171
    %v200 = vsub.f32 0.0, %v172
    %v201 = vsub.f32 0.0, %v173
    %v202 = vmul.f32 %v198, 1.442695
    %v203 = vpow.pop %v202
    %v204 = vmul.f32 %v199, 1.442695
    %v205 = vpow.pop %v204
    %v206 = vmul.f32 %v200, 1.442695
    %v207 = vpow.pop %v206
    %v208 = vmul.f32 %v201, 1.442695
    %v209 = vpow.pop %v208
    %v210 = vadd.f32 %v188, %v203
    %v211 = vadd.f32 %v191, %v205
    %v212 = vadd.f32 %v194, %v207
    %v213 = vadd.f32 %v197, %v209
    %v214 = vld [vmem:[#allocation2] sm:$0xff]
    %v215 = vld [vmem:[#allocation2 + $0x8] sm:$0xff]
    %v216 = vld [vmem:[#allocation2 + $0x10] sm:$0xff]
    %v217 = vld [vmem:[#allocation2 + $0x18] sm:$0xff]
    %v218 = vadd.f32 %v114, %v170
    %v219 = vadd.f32 %v115, %v171
    %v220 = vadd.f32 %v116, %v172
    %v221 = vadd.f32 %v117, %v173
    %v222 = vmul.f32 %v154, %v210
    %v223 = vmul.f32 %v155, %v211
    %v224 = vmul.f32 %v156, %v212
    %v225 = vmul.f32 %v157, %v213
    %v226 = vlog2.pop %v222
    %v227 = vmul.f32 %v226, 0.6931472
    %v228 = vlog2.pop %v223
    %v229 = vmul.f32 %v228, 0.6931472
    %v230 = vlog2.pop %v224
    %v231 = vmul.f32 %v230, 0.6931472
    %v232 = vlog2.pop %v225
    %v233 = vmul.f32 %v232, 0.6931472
    %v234 = vadd.f32 %v218, %v227
    %v235 = vadd.f32 %v219, %v229
    %v236 = vadd.f32 %v220, %v231
    %v237 = vadd.f32 %v221, %v233
    %v238 = vadd.f32 %v214, %v234
    %v239 = vadd.f32 %v215, %v235
    %v240 = vadd.f32 %v216, %v236
    %v241 = vadd.f32 %v217, %v237
    %vm242 = vcmask 7168
    %243 = vst.msk [vmem:[#allocation2] sm:$0xff] %vm242, %v238
    %244 = vst.msk [vmem:[#allocation2 + $0x8] sm:$0xff] %vm242, %v239
    %245 = vst.msk [vmem:[#allocation2 + $0x10] sm:$0xff] %vm242, %v240
    %246 = vst.msk [vmem:[#allocation2 + $0x18] sm:$0xff] %vm242, %v241
    // Predicated region
    $region22: #{tpu_custom_call.1} parent=1 // pred_check
      %p247 = pneg %p52
    $region23: #{tpu_custom_call.1} parent=1 // pred_check_branch
      %249 = sbr.rel (%p247) target = $region25
    $region24: #{tpu_custom_call.1} parent=1 // pred_region
      %v250 = vld [vmem:[#allocation2] sm:$0xff]
      %v251 = vld [vmem:[#allocation2 + $0x8] sm:$0xff]
      %v252 = vld [vmem:[#allocation2 + $0x10] sm:$0xff]
      %v253 = vld [vmem:[#allocation2 + $0x18] sm:$0xff]
      %v254 = vsel %vm242, %v250, 0.0
      %v255 = vsel %vm242, %v251, 0.0
      %v256 = vadd.f32 %v254, %v255
      %v257 = vsel %vm242, %v252, 0.0
      %v258 = vadd.f32 %v256, %v257
      %v259 = vsel %vm242, %v253, 0.0
      %v260 = vadd.f32 %v258, %v259
      %261 = vadd.xlane.f32.xlu0 %v260
      %v262 = vpop.xlane.xlu0 %261
      %v263 = vrot.slane %v262, 4
      %v264 = vadd.f32 %v262, %v263
      %v265 = vrot.slane %v264, 2
      %v266 = vadd.f32 %v264, %v265
      %v267 = vrot.slane %v266, 1
      %v268 = vadd.f32 %v266, %v267
      %s269 = vtos %v268
      %v270 = vstv %s269
      %v271 = vadd.f32 %v270, 0.0
      %272 = vst [vmem:[#allocation8] sm:$0xff] %v271
    $region25: #{tpu_custom_call.1} parent=1 // pred_fallthru
      _
    // Predicated region
    $region26: #{tpu_custom_call.1} parent=1 // pred_check
      _
    $region27: #{tpu_custom_call.1} parent=1 // pred_check_branch
      %274 = sbr.rel (0) target = $region29
    $region28: #{tpu_custom_call.1} parent=1 // pred_region
      %s276 = ssub.s32 128, 128
      %277 = vsyncadd [#allocation5], %s276
      %s279 = sshll.u32 [#allocation8], 4
      %s280 = int_to_ptr.vmem [resolvable:$true] %s279
      %282 = dma.vmem_to_hbm [thread:$0]  %s280, 128, %s2, [#allocation5]
    $region29: #{tpu_custom_call.1} parent=1 // pred_fallthru
      _
    // Predicated region
    $region30: #{tpu_custom_call.1} parent=1 // pred_check
      _
    $region31: #{tpu_custom_call.1} parent=1 // pred_check_branch
      %284 = sbr.rel (0) target = $region33
    $region32: #{tpu_custom_call.1} parent=1 // pred_region
      %285 = dma.done [#allocation5], 128
    $region33: #{tpu_custom_call.1} parent=1 // pred_fallthru
      _
    %286 = vsyncpa [#allocation4], 1
    %287 = vsyncpa [#allocation7], 1
    %288 = vsyncpa [#allocation5], 1

</llo_original>
